<compile_context>
chip_gen: v6e
topology: v6e:2x2x1
jax: 0.10.0
libtpu: 0.0.40
codegen_flags: <defaults>
</compile_context>

<pallas_src>
import jax
import jax.numpy as jnp
from jax.experimental import pallas as pl
from jax.experimental.pallas import tpu as pltpu


def _round_up(x, m):
    return ((x + m - 1) // m) * m


def _vmem_limit_bytes():
    """Per-generation scoped-VMEM budget: ~3/4 of physical, capped at 96 MiB.
    -> ~96 MiB on v5e/v6e (128 MiB physical), ~48 MiB on v7x (64 MiB physical)."""
    try:
        cap = int(pltpu.get_tpu_info().vmem_capacity_bytes)
    except Exception:
        cap = 64 * 1024 * 1024  # conservative (v7x-sized) fallback
    return int(min(max(32 * 1024 * 1024, cap * 3 // 4), 96 * 1024 * 1024))


# ----------------------------------------------------------------------------
# Fused kernel: one grid step = one row tile (session selected via sid table).
#   sid_ref: [num_tiles] int32 in SMEM (scalar prefetch; used only by index_maps)
#   x_ref  : [TM, Npad]   (compute dtype)  streamed over tiles
#   w1_ref : [Npad, Hpad] (compute dtype)  selected per tile's session
#   b1_ref : [1, Hpad]    (f32)
#   w2_ref : [Hpad, Npad] (compute dtype)
#   b2_ref : [1, Npad]    (f32)
#   o_ref  : [TM, Npad]   (out dtype, bf16 by default)
# Normalize/unnormalize are already folded into w1/b1/w2/b2.
# ----------------------------------------------------------------------------
def _fused_session_mlp_kernel(sid_ref, x_ref, w1_ref, b1_ref, w2_ref, b2_ref, o_ref):
    del sid_ref  # only consumed by the index_maps
    h = jnp.dot(x_ref[...], w1_ref[...], preferred_element_type=jnp.float32)
    h = jnp.maximum(h + b1_ref[...], 0.0)
    y = jnp.dot(h.astype(w2_ref.dtype), w2_ref[...],
                preferred_element_type=jnp.float32)
    o_ref[...] = (y + b2_ref[...]).astype(o_ref.dtype)


def _fused_forward(sid, xp, w1, b1, w2, b2, tile_m, out_dtype, vmem_limit):
    """sid: [num_tiles] int32; xp: [M_total, Npad]; w1: [S, Npad, Hpad];
    b1: [S,1,Hpad]; w2: [S, Hpad, Npad]; b2: [S,1,Npad].
    Returns [M_total, Npad] in out_dtype."""
    m_total, n_pad = xp.shape
    h_pad = w1.shape[2]
    assert m_total % tile_m == 0
    num_tiles = m_total // tile_m

    flops = 2 * m_total * (n_pad * h_pad + h_pad * n_pad)
    bytes_accessed = (xp.size * xp.dtype.itemsize
                      + m_total * n_pad * jnp.dtype(out_dtype).itemsize
                      + w1.size * w1.dtype.itemsize
                      + w2.size * w2.dtype.itemsize
                      + b1.size * 4 + b2.size * 4 + sid.size * 4)

    grid_spec = pltpu.PrefetchScalarGridSpec(
        num_scalar_prefetch=1,
        grid=(num_tiles,),
        in_specs=[
            # x: streamed row tiles.
            pl.BlockSpec((tile_m, n_pad), lambda t, sid_ref: (t, 0)),
            # weights/biases: selected by the tile's session id.
            pl.BlockSpec((None, n_pad, h_pad), lambda t, sid_ref: (sid_ref[t], 0, 0)),
            pl.BlockSpec((None, 1, h_pad), lambda t, sid_ref: (sid_ref[t], 0, 0)),
            pl.BlockSpec((None, h_pad, n_pad), lambda t, sid_ref: (sid_ref[t], 0, 0)),
            pl.BlockSpec((None, 1, n_pad), lambda t, sid_ref: (sid_ref[t], 0, 0)),
        ],
        out_specs=pl.BlockSpec((tile_m, n_pad), lambda t, sid_ref: (t, 0)),
    )

    return pl.pallas_call(
        _fused_session_mlp_kernel,
        out_shape=jax.ShapeDtypeStruct((m_total, n_pad), out_dtype),
        grid_spec=grid_spec,
        compiler_params=pltpu.CompilerParams(
            dimension_semantics=("parallel",),   # each output tile written once
            vmem_limit_bytes=int(vmem_limit)),
        cost_estimate=pl.CostEstimate(flops=int(flops), transcendentals=0,
                                      bytes_accessed=int(bytes_accessed)),
    )(sid, xp, w1, b1, w2, b2)


# ----------------------------------------------------------------------------
# MultiSessionWrapper equivalent: per-session params, list-in / list-out forward,
# plus a packed fast path (pack_inputs / forward_packed / unpack_outputs).
# ----------------------------------------------------------------------------
class MultiSessionWrapperPallas:
    def __init__(self, input_sizes, hidden_size=32, add_normalizer=True,
                 seed=0, compute_dtype=jnp.bfloat16, out_dtype=None,
                 tile_m_cap=2048):
        flat_sizes = [int(n) for group in input_sizes for n in group]
        if len(input_sizes) > 1:
            print("WARNING: Using separate models for each session, "
                  "consider using shared backbone instead")
        self.input_sizes = flat_sizes
        self.hidden_size = hidden_size
        self.add_normalizer = add_normalizer
        self.compute_dtype = jnp.dtype(compute_dtype)
        self.out_dtype = jnp.dtype(compute_dtype if out_dtype is None else out_dtype)
        self.tile_m_cap = tile_m_cap
        self.vmem_limit = _vmem_limit_bytes()

        # lane-dense padded sizes (multiples of 128)
        self.n_pad = _round_up(max(flat_sizes), 128)
        self.h_pad = _round_up(hidden_size, 128)

        key = jax.random.PRNGKey(seed)
        self.params = []   # raw per-session params (f32) — module semantics
        self.folded = []   # normalizer-folded per-session params (f32, unpadded)
        w1_all, b1_all, w2_all, b2_all = [], [], [], []
        for n in flat_sizes:
            key, k1, k2, kmu, kstd = jax.random.split(key, 5)
            w1 = jax.random.normal(k1, (n, hidden_size), jnp.float32) / jnp.sqrt(n)
            b1 = jnp.zeros((1, hidden_size), jnp.float32)
            w2 = (jax.random.normal(k2, (hidden_size, n), jnp.float32)
                  / jnp.sqrt(hidden_size))
            b2 = jnp.zeros((1, n), jnp.float32)
            # MuStdWrapper statistics (deterministic, per-session, per-neuron)
            mu = 0.1 * jax.random.normal(kmu, (1, n), jnp.float32)
            std = 1.0 + 0.05 * jax.random.uniform(kstd, (1, n), jnp.float32)
            self.params.append(dict(w1=w1, b1=b1, w2=w2, b2=b2, mu=mu, std=std))

            # Fold normalize/unnormalize into the weights (identity if disabled).
            # Fold is done entirely in f32; cast to compute dtype only at pack time.
            if add_normalizer:
                inv_std = 1.0 / std                      # [1, N]
                w1f = w1 * inv_std.T                     # row-scaled [N, H]
                b1f = b1 - (mu * inv_std) @ w1           # [1, H]
                w2f = w2 * std                           # col-scaled [H, N]
                b2f = b2 * std + mu                      # [1, N]
            else:
                w1f, b1f, w2f, b2f = w1, b1, w2, b2
            self.folded.append(dict(w1f=w1f, b1f=b1f, w2f=w2f, b2f=b2f))

            # Zero-pad to lane-dense [Npad, Hpad] / [Hpad, Npad] tiles.
            w1p = jnp.zeros((self.n_pad, self.h_pad), jnp.float32)
            w1p = w1p.at[:n, :hidden_size].set(w1f)
            b1p = jnp.zeros((1, self.h_pad), jnp.float32).at[:, :hidden_size].set(b1f)
            w2p = jnp.zeros((self.h_pad, self.n_pad), jnp.float32)
            w2p = w2p.at[:hidden_size, :n].set(w2f)
            b2p = jnp.zeros((1, self.n_pad), jnp.float32).at[:, :n].set(b2f)

            w1_all.append(w1p.astype(self.compute_dtype))
            b1_all.append(b1p)
            w2_all.append(w2p.astype(self.compute_dtype))
            b2_all.append(b2p)

        self.w1_packed = jnp.stack(w1_all)   # [S, Npad, Hpad] compute dtype
        self.b1_packed = jnp.stack(b1_all)   # [S, 1, Hpad]    f32
        self.w2_packed = jnp.stack(w2_all)   # [S, Hpad, Npad] compute dtype
        self.b2_packed = jnp.stack(b2_all)   # [S, 1, Npad]    f32

    # ------------------------------------------------------------ tile sizing
    def _pick_tile_m(self, max_rows):
        in_b = self.compute_dtype.itemsize
        out_b = self.out_dtype.itemsize
        # sublane pack: 16 rows for 16-bit dtypes, 8 for f32
        sub = 16 if (in_b < 4 or out_b < 4) else 8
        budget = self.vmem_limit * 9 // 10
        # resident/double-buffered weights + biases per step
        fixed = 2 * (2 * self.n_pad * self.h_pad * in_b
                     + (self.h_pad + self.n_pad) * 4)
        # double-buffered x tile + out tile per row of TM
        per_row = 2 * self.n_pad * (in_b + out_b)
        tm = max(sub, (budget - fixed) // per_row)
        tm = min(int(tm), int(self.tile_m_cap), _round_up(int(max_rows), sub))
        tm = max(sub, (tm // sub) * sub)
        return int(tm)

    # ---------------------------------------------------------- packed layout
    def pack_inputs(self, xs):
        """Pack per-session [T,B,N_s] inputs into one lane-dense row slab
        [M_total, Npad] plus a per-tile session-id table.  In production keep
        data persistently in this layout; the list<->slab conversion passes in
        __call__ are extra HBM traffic for a memory-bound kernel."""
        shapes = [tuple(x.shape) for x in xs]
        rows = [t * b for (t, b, _) in shapes]
        tm = self._pick_tile_m(max(rows))
        segs, sid, offs = [], [], []
        off = 0
        for i, (x, n) in enumerate(zip(xs, self.input_sizes)):
            t, b, nn = x.shape
            assert nn == n
            r = t * b
            r_pad = _round_up(r, tm)          # pad each session only to the tile
            x2d = x.reshape(r, n).astype(self.compute_dtype)
            x2d = jnp.pad(x2d, ((0, r_pad - r), (0, self.n_pad - n)))
            segs.append(x2d)
            sid.extend([i] * (r_pad // tm))
            offs.append(off)
            off += r_pad
        xp = jnp.concatenate(segs, axis=0) if len(segs) > 1 else segs[0]
        sid = jnp.asarray(sid, jnp.int32)
        return xp, sid, tm, shapes, offs

    def forward_packed(self, xp, sid, tm):
        """Fast path: packed slab in, packed slab out (no host-side reshaping)."""
        return _fused_forward(sid, xp, self.w1_packed, self.b1_packed,
                              self.w2_packed, self.b2_packed, tm,
                              self.out_dtype, self.vmem_limit)

    def unpack_outputs(self, yp, shapes, offs):
        preds = []
        for (t, b, n), off in zip(shapes, offs):
            preds.append(yp[off:off + t * b, :n].reshape(t, b, n))
        return preds

    # -------------------------------------------------------------- forward
    def __call__(self, xs):
        """xs: list of per-session arrays [T, B, N_s]. Returns list of same shapes."""
        assert len(xs) == len(self.input_sizes)
        xp, sid, tm, shapes, offs = self.pack_inputs(xs)
        yp = self.forward_packed(xp, sid, tm)
        return self.unpack_outputs(yp, shapes, offs)

    # -------------------------------------------- references for verification
    def reference_kernel_numerics(self, xs):
        """Pure-JAX reference with the SAME numerical scheme as the kernel
        (folded weights, compute_dtype matmul inputs, f32 accumulation).
        Returned in f32 (kernel output additionally rounds to out_dtype)."""
        preds = []
        for x, f in zip(xs, self.folded):
            t, b, n = x.shape
            xk = x.reshape(t * b, n).astype(self.compute_dtype)
            w1k = f["w1f"].astype(self.compute_dtype)
            w2k = f["w2f"].astype(self.compute_dtype)
            h = jnp.dot(xk, w1k, preferred_element_type=jnp.float32) + f["b1f"]
            h = jnp.maximum(h, 0.0).astype(self.compute_dtype)
            y = jnp.dot(h, w2k, preferred_element_type=jnp.float32) + f["b2f"]
            preds.append(y.reshape(t, b, n))
        return preds

    def reference_module(self, xs):
        """Exact f32 forward of the original module: normalize -> MLP -> unnormalize."""
        hp = jax.lax.Precision.HIGHEST
        preds = []
        for x, p in zip(xs, self.params):
            xn = (x - p["mu"]) / p["std"] if self.add_normalizer else x
            h = jnp.maximum(
                jnp.einsum("tbn,nh->tbh", xn, p["w1"], precision=hp) + p["b1"], 0.0)
            y = jnp.einsum("tbh,hn->tbn", h, p["w2"], precision=hp) + p["b2"]
            if self.add_normalizer:
                y = y * p["std"] + p["mu"]
            preds.append(y)
        return preds


if __name__ == "__main__":
    # Two sessions with different neuron counts (separate model per session).
    input_sizes = [[32, 48]]          # one dataset group, two sessions
    T, B = 8, 2

    key = jax.random.PRNGKey(0)
    xs = []
    for n in [m for g in input_sizes for m in g]:
        key, sub = jax.random.split(key)
        xs.append(jax.random.normal(sub, (T, B, n), jnp.float32))

    # ---- default path: bf16 matmul inputs AND bf16 output (HBM-byte minimal) --
    wrapper = MultiSessionWrapperPallas(input_sizes, hidden_size=32,
                                        add_normalizer=True, seed=0,
                                        compute_dtype=jnp.bfloat16)
    preds = [jax.block_until_ready(p) for p in wrapper(xs)]
    refs_k = wrapper.reference_kernel_numerics(xs)
    refs_m = wrapper.reference_module(xs)
    for p, rk, rm in zip(preds, refs_k, refs_m):
        assert p.shape == rk.shape == rm.shape
        pf = p.astype(jnp.float32)
        # strict: kernel matches the same-precision reference (+ bf16 output rounding)
        assert jnp.max(jnp.abs(pf - rk)) < 5e-2, "bf16 kernel mismatch vs reference"
        # loose structural/semantic sanity vs exact f32 module (bf16 rounding)
        assert jnp.max(jnp.abs(pf - rm)) < 0.35, "bf16 kernel far from module semantics"

    # ---- f32 path: strict check against the original module semantics ------
    wrapper32 = MultiSessionWrapperPallas(input_sizes, hidden_size=32,
                                          add_normalizer=True, seed=0,
                                          compute_dtype=jnp.float32)
    preds32 = [jax.block_until_ready(p) for p in wrapper32(xs)]
    refs_k32 = wrapper32.reference_kernel_numerics(xs)
    refs_m32 = wrapper32.reference_module(xs)
    for p, rk, rm in zip(preds32, refs_k32, refs_m32):
        assert jnp.max(jnp.abs(p - rk)) < 2e-3, "f32 kernel mismatch vs reference"
        assert jnp.max(jnp.abs(p - rm)) < 0.15, "f32 kernel far from module semantics"

    # ---- packed fast path (no list<->slab conversion inside the timed region) --
    xp, sid, tm, shapes, offs = wrapper.pack_inputs(xs)
    yp = jax.block_until_ready(wrapper.forward_packed(xp, sid, tm))
    preds_packed = wrapper.unpack_outputs(yp, shapes, offs)
    for a, b_ in zip(preds, preds_packed):
        assert jnp.array_equal(a, b_), "packed path mismatch vs list path"

    print("KERNEL_OK")
</pallas_src>

<mosaic_0001>
module attributes {stable_mosaic.version = 11 : i64} {
  func.func @_fused_session_mlp_kernel(%arg0: i32, %arg1: memref<2xi32, #tpu.memory_space<smem>>, %arg2: memref<16x128xbf16, #tpu.memory_space<vmem>>, %arg3: memref<1x128x128xbf16, #tpu.memory_space<vmem>>, %arg4: memref<1x1x128xf32, #tpu.memory_space<vmem>>, %arg5: memref<1x128x128xbf16, #tpu.memory_space<vmem>>, %arg6: memref<1x1x128xf32, #tpu.memory_space<vmem>>, %arg7: memref<16x128xbf16, #tpu.memory_space<vmem>>) attributes {dimension_semantics = [#tpu.dimension_semantics<parallel>], iteration_bounds = array<i64: 2>, scalar_prefetch = 1 : i64, scratch_operands = 0 : i64, tpu.core_type = #tpu.core_type<tc>, window_params = [{transform_indices = @transform_0, window_bounds = array<i64: 16, 128>}, {transform_indices = @transform_1, window_bounds = array<i64: 1, 128, 128>}, {transform_indices = @transform_2, window_bounds = array<i64: 1, 1, 128>}, {transform_indices = @transform_3, window_bounds = array<i64: 1, 128, 128>}, {transform_indices = @transform_4, window_bounds = array<i64: 1, 1, 128>}, {transform_indices = @transform_5, window_bounds = array<i64: 16, 128>}]} {
    %c0 = arith.constant 0 : index
    %c0_0 = arith.constant 0 : index
    %0 = vector.load %arg2[%c0, %c0_0] : memref<16x128xbf16, #tpu.memory_space<vmem>>, vector<16x128xbf16>
    %c0_1 = arith.constant 0 : index
    %c0_2 = arith.constant 0 : index
    %c0_3 = arith.constant 0 : index
    %1 = vector.load %arg3[%c0_1, %c0_2, %c0_3] : memref<1x128x128xbf16, #tpu.memory_space<vmem>>, vector<1x128x128xbf16>
    %2 = vector.shape_cast %1 : vector<1x128x128xbf16> to vector<128x128xbf16>
    %cst = arith.constant dense<0.000000e+00> : vector<16x128xf32>
    %3 = tpu.matmul %0, %2, %cst {dimension_numbers = #tpu.dot_dimension_numbers<[1], [0], [0], [1], [0, 0, 1, 1], [], []>} : vector<16x128xbf16>, vector<128x128xbf16>, vector<16x128xf32> -> vector<16x128xf32>
    %c0_4 = arith.constant 0 : index
    %c0_5 = arith.constant 0 : index
    %c0_6 = arith.constant 0 : index
    %4 = vector.load %arg4[%c0_4, %c0_5, %c0_6] : memref<1x1x128xf32, #tpu.memory_space<vmem>>, vector<1x1x128xf32>
    %5 = vector.shape_cast %4 : vector<1x1x128xf32> to vector<1x128xf32>
    %6 = vector.broadcast %5 : vector<1x128xf32> to vector<16x128xf32>
    %7 = arith.addf %3, %6 : vector<16x128xf32>
    %cst_7 = arith.constant 0.000000e+00 : f32
    %8 = vector.broadcast %cst_7 : f32 to vector<16x128xf32>
    %9 = arith.maximumf %7, %8 : vector<16x128xf32>
    %10 = arith.truncf %9 : vector<16x128xf32> to vector<16x128xbf16>
    %c0_8 = arith.constant 0 : index
    %c0_9 = arith.constant 0 : index
    %c0_10 = arith.constant 0 : index
    %11 = vector.load %arg5[%c0_8, %c0_9, %c0_10] : memref<1x128x128xbf16, #tpu.memory_space<vmem>>, vector<1x128x128xbf16>
    %12 = vector.shape_cast %11 : vector<1x128x128xbf16> to vector<128x128xbf16>
    %cst_11 = arith.constant dense<0.000000e+00> : vector<16x128xf32>
    %13 = tpu.matmul %10, %12, %cst_11 {dimension_numbers = #tpu.dot_dimension_numbers<[1], [0], [0], [1], [0, 0, 1, 1], [], []>} : vector<16x128xbf16>, vector<128x128xbf16>, vector<16x128xf32> -> vector<16x128xf32>
    %c0_12 = arith.constant 0 : index
    %c0_13 = arith.constant 0 : index
    %c0_14 = arith.constant 0 : index
    %14 = vector.load %arg6[%c0_12, %c0_13, %c0_14] : memref<1x1x128xf32, #tpu.memory_space<vmem>>, vector<1x1x128xf32>
    %15 = vector.shape_cast %14 : vector<1x1x128xf32> to vector<1x128xf32>
    %16 = vector.broadcast %15 : vector<1x128xf32> to vector<16x128xf32>
    %17 = arith.addf %13, %16 : vector<16x128xf32>
    %18 = arith.truncf %17 : vector<16x128xf32> to vector<16x128xbf16>
    %c0_15 = arith.constant 0 : index
    %c0_16 = arith.constant 0 : index
    %19 = vector.load %arg7[%c0_15, %c0_16] : memref<16x128xbf16, #tpu.memory_space<vmem>>, vector<16x128xbf16>
    tpu.vector_store %arg7[%c0_15, %c0_16], %18 {strides = array<i32>} : memref<16x128xbf16, #tpu.memory_space<vmem>>, vector<16x128xbf16>,
    return
  }
  func.func @transform_0(%arg0: i32, %arg1: memref<2xi32, #tpu.memory_space<smem>>) -> (i32, i32) {
    %c0_i32 = arith.constant 0 : i32
    %c0_i32_0 = arith.constant 0 : i32
    return %arg0, %c0_i32 : i32, i32
  }
  func.func @transform_1(%arg0: i32, %arg1: memref<2xi32, #tpu.memory_space<smem>>) -> (i32, i32, i32) {
    %0 = arith.index_cast %arg0 : i32 to index
    %1 = memref.load %arg1[%0] : memref<2xi32, #tpu.memory_space<smem>>
    %c0_i32 = arith.constant 0 : i32
    %c0_i32_0 = arith.constant 0 : i32
    %c0_i32_1 = arith.constant 0 : i32
    return %1, %c0_i32, %c0_i32_0 : i32, i32, i32
  }
  func.func @transform_2(%arg0: i32, %arg1: memref<2xi32, #tpu.memory_space<smem>>) -> (i32, i32, i32) {
    %0 = arith.index_cast %arg0 : i32 to index
    %1 = memref.load %arg1[%0] : memref<2xi32, #tpu.memory_space<smem>>
    %c0_i32 = arith.constant 0 : i32
    %c0_i32_0 = arith.constant 0 : i32
    %c0_i32_1 = arith.constant 0 : i32
    return %1, %c0_i32, %c0_i32_0 : i32, i32, i32
  }
  func.func @transform_3(%arg0: i32, %arg1: memref<2xi32, #tpu.memory_space<smem>>) -> (i32, i32, i32) {
    %0 = arith.index_cast %arg0 : i32 to index
    %1 = memref.load %arg1[%0] : memref<2xi32, #tpu.memory_space<smem>>
    %c0_i32 = arith.constant 0 : i32
    %c0_i32_0 = arith.constant 0 : i32
    %c0_i32_1 = arith.constant 0 : i32
    return %1, %c0_i32, %c0_i32_0 : i32, i32, i32
  }
  func.func @transform_4(%arg0: i32, %arg1: memref<2xi32, #tpu.memory_space<smem>>) -> (i32, i32, i32) {
    %0 = arith.index_cast %arg0 : i32 to index
    %1 = memref.load %arg1[%0] : memref<2xi32, #tpu.memory_space<smem>>
    %c0_i32 = arith.constant 0 : i32
    %c0_i32_0 = arith.constant 0 : i32
    %c0_i32_1 = arith.constant 0 : i32
    return %1, %c0_i32, %c0_i32_0 : i32, i32, i32
  }
  func.func @transform_5(%arg0: i32, %arg1: memref<2xi32, #tpu.memory_space<smem>>) -> (i32, i32) {
    %c0_i32 = arith.constant 0 : i32
    %c0_i32_0 = arith.constant 0 : i32
    return %arg0, %c0_i32 : i32, i32
  }
}

</mosaic_0001>

<llo_original>
// kernel: tpu_custom_call.1
$region0: #{tpu_custom_call.1}
  #allocation0 [shape = 'u32[]', space=smem, size = 0x4, offset = 0x4, fixed_abs, tag = 'smem constant byte address 0x4 - core index']
  #allocation1 [shape = 'u32[144,128]{1,0:T(1,128)}', space=vmem, size = 0x12000, scoped, tag = 'internal scratch']
  #allocation2 [shape = 's32[1]{0}', space=sflag, size = 0x4, scoped, tag = 'scoped memory for tpu_custom_call.1']
  #allocation3 [shape = 'u8[512]{0}', space=smem, size = 0x200, scoped, tag = 'prefetched SMEM operand 0']
  %s0 = inlined_call_operand.hbm [shape: s32[2], index: 0, kind: input, shape index: {}]
  %s1 = inlined_call_operand.hbm [shape: bf16[32,128], index: 1, kind: input, shape index: {}]
  %s2 = inlined_call_operand.hbm [shape: bf16[2,128,128], index: 2, kind: input, shape index: {}]
  %s3 = inlined_call_operand.vmem [shape: f32[2,1,128], index: 3, kind: input, shape index: {}]
  %s4 = inlined_call_operand.hbm [shape: bf16[2,128,128], index: 4, kind: input, shape index: {}]
  %s5 = inlined_call_operand.vmem [shape: f32[2,1,128], index: 5, kind: input, shape index: {}]
  %s6 = inlined_call_operand.hbm [shape: bf16[32,128], index: 6, kind: output, shape index: {}]
  %s7 = sld [smem:[#allocation0]]
  $region65: #{tpu_custom_call.1} parent=0
    _
  %s9 = ssub.s32 1, %s7
  %s10 = scalar_select 0, %s9, %s7
  %12 = dma.hbm_to_smem %s0, 16, [#allocation3], [#allocation2]
  %13 = dma.done [#allocation2], 16
  %14 = sfence
  $region1: #{tpu_custom_call.1} parent=0
    #allocation4 [shape = 'u8[8192]{0}', space=vmem, size = 0x2000, scoped, tag = 'input window, operand 1']
    #allocation5 [shape = 's32[2]{0}', space=sflag, size = 0x8, scoped, tag = 'scoped memory for tpu_custom_call.1']
    #allocation6 [shape = 's32[2]{0}', space=sflag, size = 0x8, scoped, tag = 'scoped memory for tpu_custom_call.1']
    #allocation7 [shape = 'u8[65536]{0}', space=vmem, size = 0x10000, scoped, tag = 'input window, operand 2']
    #allocation8 [shape = 's32[2]{0}', space=sflag, size = 0x8, scoped, tag = 'scoped memory for tpu_custom_call.1']
    #allocation9 [shape = 'u8[65536]{0}', space=vmem, size = 0x10000, scoped, tag = 'input window, operand 4']
    #allocation10 [shape = 'u8[8192]{0}', space=vmem, size = 0x2000, scoped, tag = 'output window, operand 0']
    %15 = vsyncpa [#allocation5], 0
    %s16 = scalar_lea.sflag [#allocation5], 1
    %17 = vsyncpa %s16, 0
    %18 = vsyncpa [#allocation8], 0
    %s19 = scalar_lea.sflag [#allocation8], 1
    %20 = vsyncpa %s19, 0
    %21 = vsyncpa [#allocation6], 0
    %s22 = scalar_lea.sflag [#allocation6], 1
    %23 = vsyncpa %s22, 0
    loop: start=0, step=1, limit=4
    $region2: #{tpu_custom_call.1} parent=1 // loop_pre_header
      _
    $region3: #{tpu_custom_call.1} parent=1 // loop_header
      %s25 = sphi 0, %s29
      %p26 = scmp.ge.s32.totalorder %s25, 4
      %s35 = sphi 0, %s37
      %s38 = sphi 0, %s35
      %s39 = sphi 0, %s38
      %s55 = sphi 0, %s39
      %s63 = sphi 0, %s65
      %s66 = sphi 0, %s63
      %s67 = sphi 0, %s66
      %s83 = sphi 0, %s67
      %s91 = sphi 0, %s93
      %s94 = sphi 0, %s91
      %s95 = sphi 0, %s94
      %s111 = sphi 0, %s95
      %s119 = sphi 0, %s121
      %s122 = sphi 0, %s119
      %s123 = sphi 0, %s122
      %s139 = sphi 0, %s123
      %s147 = sphi 0, %s149
      %s150 = sphi 0, %s147
      %s151 = sphi 0, %s150
      %s167 = sphi 0, %s151
      %s173 = sphi 0, %s175
      %s176 = sphi 0, %s173
      %s177 = sphi 0, %s176
      %s193 = sphi 0, %s177
    $region4: #{tpu_custom_call.1} parent=1 // loop_header_branch
      %28 = sbr.rel (%p26) target = $region8
    $region5: #{tpu_custom_call.1} parent=1 // loop_body
      %s30 = ssub.s32 %s25, 1
      %s31 = ssub.s32 %s25, 2
      %s32 = sadd.s32 %s25, 1
      %s33 = ssub.s32 %s25, %s32
      %p34 = scmp.eq.s32.totalorder %s33, 0
      %s36 = sadd.s32 %s35, 1
      %s37 = scalar_select %p34, %s35, %s36
      %p40 = pneg %p34
      %p41 = scmp.eq.s32.totalorder %s25, 1
      %p42 = por %p40, %p41
      %p43 = scmp.ne.s32.totalorder %s35, %s38
      %p44 = scmp.eq.s32.totalorder %s25, 0
      %p45 = por %p43, %p44
      %p46 = scmp.ne.s32.totalorder %s35, %s38
      %p47 = scmp.eq.s32.totalorder %s30, 1
      %p48 = por %p46, %p47
      %p49 = scmp.ne.s32.totalorder %s38, %s39
      %p50 = scmp.eq.s32.totalorder %s30, 0
      %p51 = por %p49, %p50
      %p52 = scmp.ne.s32.totalorder %s38, %s39
      %p53 = scmp.eq.s32.totalorder %s31, 1
      %p54 = por %p52, %p53
      %p56 = scmp.ne.s32.totalorder %s39, %s55
      %p57 = scmp.eq.s32.totalorder %s31, 0
      %p58 = por %p56, %p57
      %s59 = sld [smem:[#allocation3 + %s25]]
      %s60 = sld [smem:[#allocation3 + %s32]]
      %s61 = ssub.s32 %s59, %s60
      %p62 = scmp.eq.s32.totalorder %s61, 0
      %s64 = sadd.s32 %s63, 1
      %s65 = scalar_select %p62, %s63, %s64
      %p68 = pneg %p62
      %p69 = scmp.eq.s32.totalorder %s25, 1
      %p70 = por %p68, %p69
      %p71 = scmp.ne.s32.totalorder %s63, %s66
      %p72 = scmp.eq.s32.totalorder %s25, 0
      %p73 = por %p71, %p72
      %p74 = scmp.ne.s32.totalorder %s63, %s66
      %p75 = scmp.eq.s32.totalorder %s30, 1
      %p76 = por %p74, %p75
      %p77 = scmp.ne.s32.totalorder %s66, %s67
      %p78 = scmp.eq.s32.totalorder %s30, 0
      %p79 = por %p77, %p78
      %p80 = scmp.ne.s32.totalorder %s66, %s67
      %p81 = scmp.eq.s32.totalorder %s31, 1
      %p82 = por %p80, %p81
      %p84 = scmp.ne.s32.totalorder %s67, %s83
      %p85 = scmp.eq.s32.totalorder %s31, 0
      %p86 = por %p84, %p85
      %s87 = sld [smem:[#allocation3 + %s25]]
      %s88 = sld [smem:[#allocation3 + %s32]]
      %s89 = ssub.s32 %s87, %s88
      %p90 = scmp.eq.s32.totalorder %s89, 0
      %s92 = sadd.s32 %s91, 1
      %s93 = scalar_select %p90, %s91, %s92
      %p96 = pneg %p90
      %p97 = scmp.eq.s32.totalorder %s25, 1
      %p98 = por %p96, %p97
      %p99 = scmp.ne.s32.totalorder %s91, %s94
      %p100 = scmp.eq.s32.totalorder %s25, 0
      %p101 = por %p99, %p100
      %p102 = scmp.ne.s32.totalorder %s91, %s94
      %p103 = scmp.eq.s32.totalorder %s30, 1
      %p104 = por %p102, %p103
      %p105 = scmp.ne.s32.totalorder %s94, %s95
      %p106 = scmp.eq.s32.totalorder %s30, 0
      %p107 = por %p105, %p106
      %p108 = scmp.ne.s32.totalorder %s94, %s95
      %p109 = scmp.eq.s32.totalorder %s31, 1
      %p110 = por %p108, %p109
      %p112 = scmp.ne.s32.totalorder %s95, %s111
      %p113 = scmp.eq.s32.totalorder %s31, 0
      %p114 = por %p112, %p113
      %s115 = sld [smem:[#allocation3 + %s25]]
      %s116 = sld [smem:[#allocation3 + %s32]]
      %s117 = ssub.s32 %s115, %s116
      %p118 = scmp.eq.s32.totalorder %s117, 0
      %s120 = sadd.s32 %s119, 1
      %s121 = scalar_select %p118, %s119, %s120
      %p124 = pneg %p118
      %p125 = scmp.eq.s32.totalorder %s25, 1
      %p126 = por %p124, %p125
      %p127 = scmp.ne.s32.totalorder %s119, %s122
      %p128 = scmp.eq.s32.totalorder %s25, 0
      %p129 = por %p127, %p128
      %p130 = scmp.ne.s32.totalorder %s119, %s122
      %p131 = scmp.eq.s32.totalorder %s30, 1
      %p132 = por %p130, %p131
      %p133 = scmp.ne.s32.totalorder %s122, %s123
      %p134 = scmp.eq.s32.totalorder %s30, 0
      %p135 = por %p133, %p134
      %p136 = scmp.ne.s32.totalorder %s122, %s123
      %p137 = scmp.eq.s32.totalorder %s31, 1
      %p138 = por %p136, %p137
      %p140 = scmp.ne.s32.totalorder %s123, %s139
      %p141 = scmp.eq.s32.totalorder %s31, 0
      %p142 = por %p140, %p141
      %s143 = sld [smem:[#allocation3 + %s25]]
      %s144 = sld [smem:[#allocation3 + %s32]]
      %s145 = ssub.s32 %s143, %s144
      %p146 = scmp.eq.s32.totalorder %s145, 0
      %s148 = sadd.s32 %s147, 1
      %s149 = scalar_select %p146, %s147, %s148
      %p152 = pneg %p146
      %p153 = scmp.eq.s32.totalorder %s25, 1
      %p154 = por %p152, %p153
      %p155 = scmp.ne.s32.totalorder %s147, %s150
      %p156 = scmp.eq.s32.totalorder %s25, 0
      %p157 = por %p155, %p156
      %p158 = scmp.ne.s32.totalorder %s147, %s150
      %p159 = scmp.eq.s32.totalorder %s30, 1
      %p160 = por %p158, %p159
      %p161 = scmp.ne.s32.totalorder %s150, %s151
      %p162 = scmp.eq.s32.totalorder %s30, 0
      %p163 = por %p161, %p162
      %p164 = scmp.ne.s32.totalorder %s150, %s151
      %p165 = scmp.eq.s32.totalorder %s31, 1
      %p166 = por %p164, %p165
      %p168 = scmp.ne.s32.totalorder %s151, %s167
      %p169 = scmp.eq.s32.totalorder %s31, 0
      %p170 = por %p168, %p169
      %s171 = ssub.s32 %s25, %s32
      %p172 = scmp.eq.s32.totalorder %s171, 0
      %s174 = sadd.s32 %s173, 1
      %s175 = scalar_select %p172, %s173, %s174
      %p178 = pneg %p172
      %p179 = scmp.eq.s32.totalorder %s25, 1
      %p180 = por %p178, %p179
      %p181 = scmp.ne.s32.totalorder %s173, %s176
      %p182 = scmp.eq.s32.totalorder %s25, 0
      %p183 = por %p181, %p182
      %p184 = scmp.ne.s32.totalorder %s173, %s176
      %p185 = scmp.eq.s32.totalorder %s30, 1
      %p186 = por %p184, %p185
      %p187 = scmp.ne.s32.totalorder %s176, %s177
      %p188 = scmp.eq.s32.totalorder %s30, 0
      %p189 = por %p187, %p188
      %p190 = scmp.ne.s32.totalorder %s176, %s177
      %p191 = scmp.eq.s32.totalorder %s31, 1
      %p192 = por %p190, %p191
      %p194 = scmp.ne.s32.totalorder %s177, %s193
      %p195 = scmp.eq.s32.totalorder %s31, 0
      %p196 = por %p194, %p195
      %p197 = scmp.le.s32.totalorder 1, %s25
      %p198 = scmp.lt.s32.totalorder %s25, 3
      %p199 = pnand %p197, %p198
      %p200 = pneg %p199
      // Predicated region
      $region9: #{tpu_custom_call.1} parent=5 // pred_check
        _
      $region10: #{tpu_custom_call.1} parent=5 // pred_check_branch
        %202 = sbr.rel (%p199) target = $region12
      $region11: #{tpu_custom_call.1} parent=5 // pred_region
        %s203 = ssub.s32 %s25, 1
      $region12: #{tpu_custom_call.1} parent=5 // pred_fallthru
        _
      %p204 = scmp.lt.s32.totalorder %s25, 2
      // Predicated region
      $region13: #{tpu_custom_call.1} parent=5 // pred_check
        %p205 = pneg %p204
      $region14: #{tpu_custom_call.1} parent=5 // pred_check_branch
        %207 = sbr.rel (%p205) target = $region16
      $region15: #{tpu_custom_call.1} parent=5 // pred_region
        // Predicated region
        $region17: #{tpu_custom_call.1} parent=15 // pred_check
          %p208 = pneg %p45
        $region18: #{tpu_custom_call.1} parent=15 // pred_check_branch
          %210 = sbr.rel (%p208) target = $region20
        $region19: #{tpu_custom_call.1} parent=15 // pred_region
          %s211 = sand.u32 %s35, 1
          %s212 = scalar_lea.sflag [#allocation5], %s211
          %s213 = sand.u32 %s35, 1
          %s214 = smul.addr %s213, 8
          %s215 = scalar_lea.vmem [#allocation4], %s214
          %s216 = smul.u32 2, %s25
          %s218 = ssub.s32 128, 128
          %219 = vsyncadd %s212, %s218
          %s220 = smul.addr %s216, 64
          %s221 = scalar_lea.hbm %s1, %s220
          %s222 = sshll.u32 %s215, 4
          %s223 = int_to_ptr.vmem [resolvable:$true] %s222
          %228 = dma.hbm_to_vmem [thread:$0]  %s221, 128, %s223, %s212, 64, 64, 4
        $region20: #{tpu_custom_call.1} parent=15 // pred_fallthru
          _
        // Predicated region
        $region21: #{tpu_custom_call.1} parent=15 // pred_check
          %p229 = pneg %p73
        $region22: #{tpu_custom_call.1} parent=15 // pred_check_branch
          %231 = sbr.rel (%p229) target = $region24
        $region23: #{tpu_custom_call.1} parent=15 // pred_region
          %s232 = sand.u32 %s25, 1
          %s233 = scalar_lea.sflag [#allocation8], %s232
          %s234 = sand.u32 %s63, 1
          %s235 = smul.addr %s234, 64
          %s236 = scalar_lea.vmem [#allocation7], %s235
          %s237 = sld [smem:[#allocation3 + %s25]]
          %s239 = ssub.s32 1024, 1024
          %240 = vsyncadd %s233, %s239
          %s241 = smul.addr %s237, 16
          %s242 = smul.addr %s241, 64
          %s243 = scalar_lea.hbm %s2, %s242
          %s244 = sshll.u32 %s236, 4
          %s245 = int_to_ptr.vmem [resolvable:$true] %s244
          %250 = dma.hbm_to_vmem [thread:$0]  %s243, 1024, %s245, %s233, 64, 64, 4
        $region24: #{tpu_custom_call.1} parent=15 // pred_fallthru
          _
        // Predicated region
        $region25: #{tpu_custom_call.1} parent=15 // pred_check
          %p251 = pneg %p101
        $region26: #{tpu_custom_call.1} parent=15 // pred_check_branch
          %253 = sbr.rel (%p251) target = $region28
        $region27: #{tpu_custom_call.1} parent=15 // pred_region
          %s254 = sld [smem:[#allocation3 + %s25]]
          %p255 = scmp.lt.s32.totalorder %s254, 1
          %s256 = scalar_select %p255, %s254, 1
          %s257 = scalar_lea.vmem %s3, %s256
          %s258 = sld [smem:[#allocation3 + %s25]]
        $region28: #{tpu_custom_call.1} parent=15 // pred_fallthru
          _
        // Predicated region
        $region29: #{tpu_custom_call.1} parent=15 // pred_check
          %p259 = pneg %p129
        $region30: #{tpu_custom_call.1} parent=15 // pred_check_branch
          %261 = sbr.rel (%p259) target = $region32
        $region31: #{tpu_custom_call.1} parent=15 // pred_region
          %s262 = sand.u32 %s25, 1
          %s263 = scalar_lea.sflag [#allocation8], %s262
          %s264 = sand.u32 %s119, 1
          %s265 = smul.addr %s264, 64
          %s266 = scalar_lea.vmem [#allocation9], %s265
          %s267 = sld [smem:[#allocation3 + %s25]]
          %s269 = ssub.s32 1024, 1024
          %270 = vsyncadd %s263, %s269
          %s271 = smul.addr %s267, 16
          %s272 = smul.addr %s271, 64
          %s273 = scalar_lea.hbm %s4, %s272
          %s274 = sshll.u32 %s266, 4
          %s275 = int_to_ptr.vmem [resolvable:$true] %s274
          %280 = dma.hbm_to_vmem [thread:$0]  %s273, 1024, %s275, %s263, 64, 64, 4
        $region32: #{tpu_custom_call.1} parent=15 // pred_fallthru
          _
        // Predicated region
        $region33: #{tpu_custom_call.1} parent=15 // pred_check
          %p281 = pneg %p157
        $region34: #{tpu_custom_call.1} parent=15 // pred_check_branch
          %283 = sbr.rel (%p281) target = $region36
        $region35: #{tpu_custom_call.1} parent=15 // pred_region
          %s284 = sld [smem:[#allocation3 + %s25]]
          %p285 = scmp.lt.s32.totalorder %s284, 1
          %s286 = scalar_select %p285, %s284, 1
          %s287 = scalar_lea.vmem %s5, %s286
          %s288 = sld [smem:[#allocation3 + %s25]]
        $region36: #{tpu_custom_call.1} parent=15 // pred_fallthru
          _
      $region16: #{tpu_custom_call.1} parent=5 // pred_fallthru
        _
      %p289 = scmp.le.s32.totalorder 1, %s25
      %p290 = scmp.lt.s32.totalorder %s25, 3
      %p291 = pnand %p289, %p290
      %p292 = pneg %p291
      // Predicated region
      $region37: #{tpu_custom_call.1} parent=5 // pred_check
        _
      $region38: #{tpu_custom_call.1} parent=5 // pred_check_branch
        %294 = sbr.rel (%p291) target = $region40
      $region39: #{tpu_custom_call.1} parent=5 // pred_region
        %s295 = ssub.s32 %s25, 1
        %s296 = sand.u32 %s38, 1
        %s297 = scalar_lea.sflag [#allocation5], %s296
        %s298 = sand.u32 %s38, 1
        %s299 = smul.addr %s298, 8
        %s300 = scalar_lea.vmem [#allocation4], %s299
        // Predicated region
        $region41: #{tpu_custom_call.1} parent=39 // pred_check
          %p301 = pneg %p51
        $region42: #{tpu_custom_call.1} parent=39 // pred_check_branch
          %303 = sbr.rel (%p301) target = $region44
        $region43: #{tpu_custom_call.1} parent=39 // pred_region
          %304 = dma.done %s297, 128
        $region44: #{tpu_custom_call.1} parent=39 // pred_fallthru
          _
        %s305 = sand.u32 %s30, 1
        %s306 = scalar_lea.sflag [#allocation8], %s305
        %s307 = sand.u32 %s66, 1
        %s308 = smul.addr %s307, 64
        %s309 = scalar_lea.vmem [#allocation7], %s308
        // Predicated region
        $region45: #{tpu_custom_call.1} parent=39 // pred_check
          %p310 = pneg %p79
        $region46: #{tpu_custom_call.1} parent=39 // pred_check_branch
          %312 = sbr.rel (%p310) target = $region48
        $region47: #{tpu_custom_call.1} parent=39 // pred_region
          %313 = dma.done %s306, 1024
        $region48: #{tpu_custom_call.1} parent=39 // pred_fallthru
          _
        %s314 = sand.u32 %s30, 1
        %s315 = scalar_lea.sflag [#allocation8], %s314
        %s316 = sand.u32 %s122, 1
        %s317 = smul.addr %s316, 64
        %s318 = scalar_lea.vmem [#allocation9], %s317
        // Predicated region
        $region49: #{tpu_custom_call.1} parent=39 // pred_check
          %p319 = pneg %p135
        $region50: #{tpu_custom_call.1} parent=39 // pred_check_branch
          %321 = sbr.rel (%p319) target = $region52
        $region51: #{tpu_custom_call.1} parent=39 // pred_region
          %322 = dma.done %s315, 1024
        $region52: #{tpu_custom_call.1} parent=39 // pred_fallthru
          _
        %s323 = sand.u32 %s38, 1
        %s324 = scalar_lea.sflag [#allocation5], %s323
        %s325 = sand.u32 %s38, 1
        %s326 = smul.addr %s325, 8
        %s327 = scalar_lea.vmem [#allocation4], %s326
        %p328 = pneg %p51
        %p329 = pneg %p48
        %s330 = sand.u32 %s30, 1
        %s331 = scalar_lea.sflag [#allocation8], %s330
        %s332 = sand.u32 %s66, 1
        %s333 = smul.addr %s332, 64
        %s334 = scalar_lea.vmem [#allocation7], %s333
        %p335 = pneg %p79
        %p336 = pneg %p76
        %s337 = sld [smem:[#allocation3 + %s30]]
        %p338 = scmp.lt.s32.totalorder %s337, 1
        %s339 = scalar_select %p338, %s337, 1
        %s340 = scalar_lea.vmem %s3, %s339
        %p341 = pneg %p107
        %p342 = pneg %p104
        %s343 = sand.u32 %s30, 1
        %s344 = scalar_lea.sflag [#allocation8], %s343
        %s345 = sand.u32 %s122, 1
        %s346 = smul.addr %s345, 64
        %s347 = scalar_lea.vmem [#allocation9], %s346
        %p348 = pneg %p135
        %p349 = pneg %p132
        %s350 = sld [smem:[#allocation3 + %s30]]
        %p351 = scmp.lt.s32.totalorder %s350, 1
        %s352 = scalar_select %p351, %s350, 1
        %s353 = scalar_lea.vmem %s5, %s352
        %p354 = pneg %p163
        %p355 = pneg %p160
        %p356 = pneg %p189
        %p357 = pneg %p186
        %s358 = sand.u32 %s176, 1
        %s359 = scalar_lea.sflag [#allocation6], %s358
        %s360 = sand.u32 %s176, 1
        %s361 = smul.addr %s360, 8
        %s362 = scalar_lea.vmem [#allocation10], %s361
        %s363 = smul.u32 2, %s30
        %s364 = sld [smem:[#allocation3 + %s30]]
        %s365 = sld [smem:[#allocation3 + %s30]]
        %p366 = scmp.lt.s32.totalorder %s365, 1
        %s367 = scalar_select %p366, %s365, 1
        %s368 = scalar_lea.vmem %s3, %s367
        %s369 = sld [smem:[#allocation3 + %s30]]
        %s370 = sld [smem:[#allocation3 + %s30]]
        %s371 = sld [smem:[#allocation3 + %s30]]
        %p372 = scmp.lt.s32.totalorder %s371, 1
        %s373 = scalar_select %p372, %s371, 1
        %s374 = scalar_lea.vmem %s5, %s373
        %s375 = sld [smem:[#allocation3 + %s30]]
        %s376 = smul.u32 2, %s30
        %v378 = vld [vmem:[%s300] sm:$0xf]
        %v379 = vld [vmem:[%s300 + $0x4] sm:$0xf]
        %v380 = vld [vmem:[%s309] sm:$0xf]
        %v381 = vld [vmem:[%s309 + $0x4] sm:$0xf]
        %v382 = vld [vmem:[%s309 + $0x8] sm:$0xf]
        %v383 = vld [vmem:[%s309 + $0xc] sm:$0xf]
        %v384 = vld [vmem:[%s309 + $0x10] sm:$0xf]
        %v385 = vld [vmem:[%s309 + $0x14] sm:$0xf]
        %v386 = vld [vmem:[%s309 + $0x18] sm:$0xf]
        %v387 = vld [vmem:[%s309 + $0x1c] sm:$0xf]
        %v388 = vld [vmem:[%s309 + $0x20] sm:$0xf]
        %v389 = vld [vmem:[%s309 + $0x24] sm:$0xf]
        %v390 = vld [vmem:[%s309 + $0x28] sm:$0xf]
        %v391 = vld [vmem:[%s309 + $0x2c] sm:$0xf]
        %v392 = vld [vmem:[%s309 + $0x30] sm:$0xf]
        %v393 = vld [vmem:[%s309 + $0x34] sm:$0xf]
        %v394 = vld [vmem:[%s309 + $0x38] sm:$0xf]
        %v395 = vld [vmem:[%s309 + $0x3c] sm:$0xf]
        %v396 = vld [vmem:[%s368] sm:$0x1]
        %v398 = vlaneseq
        %v399 = vshrl.u32 %v398, 7
        %v400 = vsub.s32 0, %v399
        %v401 = vrot.slane %v396, %v400
        %v405 = vunpack.c.l.b16 %v378
        %v406 = vunpack.c.l.b16 %v379
        %v407 = vpack.c.b16 %v406, %v405
        %v425 = vunpack.c.l.b16 %v380
        %v426 = vunpack.c.l.b16 %v381
        %v427 = vunpack.c.l.b16 %v382
        %v428 = vunpack.c.l.b16 %v383
        %v429 = vunpack.c.l.b16 %v384
        %v430 = vunpack.c.l.b16 %v385
        %v431 = vunpack.c.l.b16 %v386
        %v432 = vunpack.c.l.b16 %v387
        %v433 = vunpack.c.l.b16 %v388
        %v434 = vunpack.c.l.b16 %v389
        %v435 = vunpack.c.l.b16 %v390
        %v436 = vunpack.c.l.b16 %v391
        %v437 = vunpack.c.l.b16 %v392
        %v438 = vunpack.c.l.b16 %v393
        %v439 = vunpack.c.l.b16 %v394
        %v440 = vunpack.c.l.b16 %v395
        %v441 = vpack.c.b16 %v426, %v425
        %v442 = vpack.c.b16 %v428, %v427
        %v443 = vpack.c.b16 %v430, %v429
        %v444 = vpack.c.b16 %v432, %v431
        %v445 = vpack.c.b16 %v434, %v433
        %v446 = vpack.c.b16 %v436, %v435
        %v447 = vpack.c.b16 %v438, %v437
        %v448 = vpack.c.b16 %v440, %v439
        %457 = vmatprep.subr.bf16.mxu0 0
        %458 = vmatpush1.bf16.msra.mxu0 %v448
        %459 = vmatprep.subr.bf16.mxu0 0
        %460 = vmatpush1.bf16.msra.mxu0 %v447
        %461 = vmatprep.subr.bf16.mxu0 0
        %462 = vmatpush1.bf16.msra.mxu0 %v446
        %463 = vmatprep.subr.bf16.mxu0 0
        %464 = vmatpush1.bf16.msra.mxu0 %v445
        %465 = vmatprep.subr.bf16.mxu0 0
        %466 = vmatpush1.bf16.msra.mxu0 %v444
        %467 = vmatprep.subr.bf16.mxu0 0
        %468 = vmatpush1.bf16.msra.mxu0 %v443
        %469 = vmatprep.subr.bf16.mxu0 0
        %470 = vmatpush1.bf16.msra.mxu0 %v442
        %471 = vmatprep.subr.bf16.mxu0 0
        %472 = vmatpush1.bf16.msra.mxu0 %v441
        %473 = vmatprep.subr.bf16.mxu0 0
        %474 = vmatpush2.bf16.msra.mxu0 0
        %475 = vmatprep.subr.bf16.mxu0 0
        %476 = vmatpush2.bf16.msra.mxu0 0
        %477 = vmatprep.subr.bf16.mxu0 0
        %478 = vmatpush2.bf16.msra.mxu0 0
        %479 = vmatprep.subr.bf16.mxu0 0
        %480 = vmatpush2.bf16.msra.mxu0 0
        %481 = vmatprep.subr.bf16.mxu0 0
        %482 = vmatpush2.bf16.msra.mxu0 0
        %483 = vmatprep.subr.bf16.mxu0 0
        %484 = vmatpush2.bf16.msra.mxu0 0
        %485 = vmatprep.subr.bf16.mxu0 0
        %486 = vmatpush2.bf16.msra.mxu0 0
        %487 = vmatprep.subr.bf16.mxu0 0
        %488 = vmatpush2.bf16.msra.mxu0 0
        %489 = vmatprep.mubr.bf16.mxu0 0
        %490 = vmatmul.mubr.bf16.gmra.mxu0 %v407
        %v491 = vpop.f32.mrf.mxu0
        %v492 = vadd.f32 %v401, %v491
        %v493 = vpop.f32.mrf.mxu0
        %v494 = vpop.f32.mrf.mxu0
        %v495 = vadd.f32 %v401, %v494
        %v496 = vpop.f32.mrf.mxu0
        %497 = vdwg.mxu0
        %v498 = vmax.f32 %v492, 0.0
        %v499 = vmax.f32 %v495, 0.0
        %v500 = vpack.c.bf16 %v499, %v498
        %v501 = vld [vmem:[%s318] sm:$0xf]
        %v502 = vld [vmem:[%s318 + $0x4] sm:$0xf]
        %v503 = vld [vmem:[%s318 + $0x8] sm:$0xf]
        %v504 = vld [vmem:[%s318 + $0xc] sm:$0xf]
        %v505 = vld [vmem:[%s318 + $0x10] sm:$0xf]
        %v506 = vld [vmem:[%s318 + $0x14] sm:$0xf]
        %v507 = vld [vmem:[%s318 + $0x18] sm:$0xf]
        %v508 = vld [vmem:[%s318 + $0x1c] sm:$0xf]
        %v509 = vld [vmem:[%s318 + $0x20] sm:$0xf]
        %v510 = vld [vmem:[%s318 + $0x24] sm:$0xf]
        %v511 = vld [vmem:[%s318 + $0x28] sm:$0xf]
        %v512 = vld [vmem:[%s318 + $0x2c] sm:$0xf]
        %v513 = vld [vmem:[%s318 + $0x30] sm:$0xf]
        %v514 = vld [vmem:[%s318 + $0x34] sm:$0xf]
        %v515 = vld [vmem:[%s318 + $0x38] sm:$0xf]
        %v516 = vld [vmem:[%s318 + $0x3c] sm:$0xf]
        %v517 = vld [vmem:[%s374] sm:$0x1]
        %v519 = vlaneseq
        %v520 = vshrl.u32 %v519, 7
        %v521 = vsub.s32 0, %v520
        %v522 = vrot.slane %v517, %v521
        %v540 = vunpack.c.l.b16 %v501
        %v541 = vunpack.c.l.b16 %v502
        %v542 = vunpack.c.l.b16 %v503
        %v543 = vunpack.c.l.b16 %v504
        %v544 = vunpack.c.l.b16 %v505
        %v545 = vunpack.c.l.b16 %v506
        %v546 = vunpack.c.l.b16 %v507
        %v547 = vunpack.c.l.b16 %v508
        %v548 = vunpack.c.l.b16 %v509
        %v549 = vunpack.c.l.b16 %v510
        %v550 = vunpack.c.l.b16 %v511
        %v551 = vunpack.c.l.b16 %v512
        %v552 = vunpack.c.l.b16 %v513
        %v553 = vunpack.c.l.b16 %v514
        %v554 = vunpack.c.l.b16 %v515
        %v555 = vunpack.c.l.b16 %v516
        %v556 = vpack.c.b16 %v541, %v540
        %v557 = vpack.c.b16 %v543, %v542
        %v558 = vpack.c.b16 %v545, %v544
        %v559 = vpack.c.b16 %v547, %v546
        %v560 = vpack.c.b16 %v549, %v548
        %v561 = vpack.c.b16 %v551, %v550
        %v562 = vpack.c.b16 %v553, %v552
        %v563 = vpack.c.b16 %v555, %v554
        %572 = vmatprep.subr.bf16.mxu0 0
        %573 = vmatpush1.bf16.msra.mxu0 %v563
        %574 = vmatprep.subr.bf16.mxu0 0
        %575 = vmatpush1.bf16.msra.mxu0 %v562
        %576 = vmatprep.subr.bf16.mxu0 0
        %577 = vmatpush1.bf16.msra.mxu0 %v561
        %578 = vmatprep.subr.bf16.mxu0 0
        %579 = vmatpush1.bf16.msra.mxu0 %v560
        %580 = vmatprep.subr.bf16.mxu0 0
        %581 = vmatpush1.bf16.msra.mxu0 %v559
        %582 = vmatprep.subr.bf16.mxu0 0
        %583 = vmatpush1.bf16.msra.mxu0 %v558
        %584 = vmatprep.subr.bf16.mxu0 0
        %585 = vmatpush1.bf16.msra.mxu0 %v557
        %586 = vmatprep.subr.bf16.mxu0 0
        %587 = vmatpush1.bf16.msra.mxu0 %v556
        %588 = vmatprep.subr.bf16.mxu0 0
        %589 = vmatpush2.bf16.msra.mxu0 0
        %590 = vmatprep.subr.bf16.mxu0 0
        %591 = vmatpush2.bf16.msra.mxu0 0
        %592 = vmatprep.subr.bf16.mxu0 0
        %593 = vmatpush2.bf16.msra.mxu0 0
        %594 = vmatprep.subr.bf16.mxu0 0
        %595 = vmatpush2.bf16.msra.mxu0 0
        %596 = vmatprep.subr.bf16.mxu0 0
        %597 = vmatpush2.bf16.msra.mxu0 0
        %598 = vmatprep.subr.bf16.mxu0 0
        %599 = vmatpush2.bf16.msra.mxu0 0
        %600 = vmatprep.subr.bf16.mxu0 0
        %601 = vmatpush2.bf16.msra.mxu0 0
        %602 = vmatprep.subr.bf16.mxu0 0
        %603 = vmatpush2.bf16.msra.mxu0 0
        %604 = vmatprep.mubr.bf16.mxu0 0
        %605 = vmatmul.mubr.bf16.gmra.mxu0 %v500
        %v606 = vpop.f32.mrf.mxu0
        %v607 = vadd.f32 %v522, %v606
        %v608 = vpop.f32.mrf.mxu0
        %v609 = vpop.f32.mrf.mxu0
        %v610 = vadd.f32 %v522, %v609
        %v611 = vpop.f32.mrf.mxu0
        %612 = vdwg.mxu0
        %v613 = vpack.c.bf16 %v610, %v607
        %v615 = vunpack.c.l.b16 %v613
        %v616 = vunpack.c.h.b16 %v613
        %v617 = vpack.c.b16 %v615, %v615
        %v618 = vpack.c.b16 %v616, %v616
        %621 = vst [vmem:[%s362] sm:$0xf] %v617
        %622 = vst [vmem:[%s362 + $0x4] sm:$0xf] %v618
        %s623 = sand.u32 %s176, 1
        %s624 = scalar_lea.sflag [#allocation6], %s623
        %s625 = sand.u32 %s176, 1
        %s626 = smul.addr %s625, 8
        %s627 = scalar_lea.vmem [#allocation10], %s626
        // Predicated region
        $region53: #{tpu_custom_call.1} parent=39 // pred_check
          %p628 = pneg %p186
        $region54: #{tpu_custom_call.1} parent=39 // pred_check_branch
          %630 = sbr.rel (%p628) target = $region56
        $region55: #{tpu_custom_call.1} parent=39 // pred_region
          %s631 = smul.u32 2, %s30
          %s633 = ssub.s32 128, 128
          %634 = vsyncadd %s624, %s633
          %s635 = smul.addr %s631, 64
          %s636 = scalar_lea.hbm %s6, %s635
          %s637 = sshll.u32 %s627, 4
          %s638 = int_to_ptr.vmem [resolvable:$true] %s637
          %643 = dma.vmem_to_hbm [thread:$0]  %s638, 128, %s636, %s624, 64, 64, 4
        $region56: #{tpu_custom_call.1} parent=39 // pred_fallthru
          _
      $region40: #{tpu_custom_call.1} parent=5 // pred_fallthru
        _
      %p644 = scmp.le.s32.totalorder 2, %s25
      // Predicated region
      $region57: #{tpu_custom_call.1} parent=5 // pred_check
        %p645 = pneg %p644
      $region58: #{tpu_custom_call.1} parent=5 // pred_check_branch
        %647 = sbr.rel (%p645) target = $region60
      $region59: #{tpu_custom_call.1} parent=5 // pred_region
        %s648 = ssub.s32 %s25, 2
        // Predicated region
        $region61: #{tpu_custom_call.1} parent=59 // pred_check
          %p649 = pneg %p192
        $region62: #{tpu_custom_call.1} parent=59 // pred_check_branch
          %651 = sbr.rel (%p649) target = $region64
        $region63: #{tpu_custom_call.1} parent=59 // pred_region
          %s652 = sand.u32 %s177, 1
          %s653 = scalar_lea.sflag [#allocation6], %s652
          %s654 = sand.u32 %s177, 1
          %s655 = smul.addr %s654, 8
          %s656 = scalar_lea.vmem [#allocation10], %s655
          %657 = dma.done %s653, 128
        $region64: #{tpu_custom_call.1} parent=59 // pred_fallthru
          _
      $region60: #{tpu_custom_call.1} parent=5 // pred_fallthru
        _
    $region6: #{tpu_custom_call.1} parent=1 // loop_footer
      %s29 = sadd.s32 1, %s25
    $region7: #{tpu_custom_call.1} parent=1 // loop_footer_branch
      %24 = sbr.rel target = $region3
    $region8: #{tpu_custom_call.1} parent=1 // loop_exit
      _
    %658 = vsyncpa [#allocation5], 1
    %s659 = scalar_lea.sflag [#allocation5], 1
    %660 = vsyncpa %s659, 1
    %661 = vsyncpa [#allocation8], 1
    %s662 = scalar_lea.sflag [#allocation8], 1
    %663 = vsyncpa %s662, 1
    %664 = vsyncpa [#allocation6], 1
    %s665 = scalar_lea.sflag [#allocation6], 1
    %666 = vsyncpa %s665, 1

</llo_original>
